<compile_context>
chip_gen: v7x
topology: tpu7x:2x2x1
jax: 0.10.0
libtpu: 0.0.40
codegen_flags: <defaults>
</compile_context>

<pallas_src>
import functools

import jax
import jax.numpy as jnp
from jax.experimental import pallas as pl
from jax.experimental.pallas import tpu as pltpu


def _make_mlp_kernel(n_layers):
    """Fused MLP kernel. refs = (x_t, w0, b0, w1, b1, ..., out_t).

    x_t block:  (input_dim, TILE_B)   -- batch on lanes
    w_i block:  (out_d, in_d)         -- resident across grid steps
    b_i block:  (out_d, 1)
    out block:  (out_dim, TILE_B)     -- lane-dense stores
    """

    def kernel(*refs):
        x_ref = refs[0]
        o_ref = refs[-1]
        param_refs = refs[1:-1]

        h = x_ref[...]  # (in_dim, TILE_B)
        for i in range(n_layers):
            w = param_refs[2 * i][...]                        # (out_d, in_d)
            b = param_refs[2 * i + 1][...].astype(jnp.float32)  # (out_d, 1)
            # MXU matmul in stored dtype, f32 accumulation.
            h = jnp.dot(w, h, preferred_element_type=jnp.float32) + b
            if i == n_layers - 1:
                h = jax.nn.sigmoid(h)   # final layer: Sigmoid (EUP, f32)
            else:
                h = jnp.tanh(h)         # hidden layers: Tanh
        o_ref[...] = h.astype(o_ref.dtype)

    return kernel


def init_params(key, input_dim=10, output_dim=1, hidden_dim=64, hidden_layers=0,
                dtype=jnp.float32):
    """Mirrors nn.Linear default init (uniform +/- 1/sqrt(fan_in)).

    Returns list of (W, b) with W: (out_dim, in_dim) (PyTorch layout), b: (out_dim, 1).
    """
    params = []
    for i in range(hidden_layers + 1):
        in_dim = input_dim if i == 0 else hidden_dim
        out_dim = output_dim if i == hidden_layers else hidden_dim
        key, kw, kb = jax.random.split(key, 3)
        bound = 1.0 / jnp.sqrt(jnp.asarray(in_dim, jnp.float32))
        w = jax.random.uniform(kw, (out_dim, in_dim), dtype, -bound, bound)
        b = jax.random.uniform(kb, (out_dim, 1), dtype, -bound, bound)
        params.append((w, b))
    return params


@functools.partial(jax.jit, static_argnames=("tile_b", "interpret"))
def original_baseline_adv_forward(x, params, tile_b=None, interpret=False):
    """Forward pass of OriginalBaselineAdv via one batch-gridded Pallas kernel.

    x: (B, input_dim). Returns the squeezed output, matching `self.adv(x).squeeze()`.
    """
    n_layers = len(params)
    flat = []
    for (w, b) in params:
        flat.extend([w, b])

    batch, input_dim = x.shape
    out_dim = params[-1][0].shape[0]

    # Batch tile: <= 512 rows (amortizes per-step overhead; tiny vs scoped VMEM on
    # v5e/v6e/v7x).  Small batches run as a single full-extent block.
    if tile_b is None:
        tile_b = batch if batch <= 512 else 512
    tile_b = min(tile_b, batch)
    grid = (pl.cdiv(batch, tile_b),)

    # Layout plumbing: put batch on lanes (features become sublanes).
    x_t = x.T  # (input_dim, B)

    in_specs = [pl.BlockSpec((input_dim, tile_b), lambda i: (0, i))]
    for (w, b) in params:
        # Weights/biases: same block every step -> DMA'd once, resident in VMEM.
        in_specs.append(pl.BlockSpec(w.shape, lambda i: (0, 0)))
        in_specs.append(pl.BlockSpec(b.shape, lambda i: (0, 0)))

    y_t = pl.pallas_call(
        _make_mlp_kernel(n_layers),
        out_shape=jax.ShapeDtypeStruct((out_dim, batch), x.dtype),
        grid=grid,
        in_specs=in_specs,
        out_specs=pl.BlockSpec((out_dim, tile_b), lambda i: (0, i)),
        compiler_params=pltpu.CompilerParams(
            dimension_semantics=("parallel",),          # megacore-shardable on v7x
            vmem_limit_bytes=32 * 1024 * 1024,           # safe on v5e/v6e/v7x
        ),
        interpret=interpret,
    )(x_t, *flat)

    # y_t is (out_dim, B); PyTorch returns adv(x).squeeze() on (B, out_dim).
    return jnp.squeeze(y_t.T)


def _reference_forward(x, params):
    h = x.astype(jnp.float32)
    n = len(params)
    for i, (w, b) in enumerate(params):
        h = h @ w.astype(jnp.float32).T + b.astype(jnp.float32)[:, 0]
        h = jax.nn.sigmoid(h) if i == n - 1 else jnp.tanh(h)
    return jnp.squeeze(h.astype(x.dtype))


if __name__ == "__main__":
    key = jax.random.PRNGKey(0)
    kx, kp0, kp1, kp2, kx2 = jax.random.split(key, 5)

    input_dim, hidden_dim, output_dim = 10, 32, 1
    ok = True

    # Case 1: module defaults (hidden_layers=0): Linear(10,1) -> Sigmoid -> squeeze
    batch = 8
    x = jax.random.normal(kx, (batch, input_dim), jnp.float32)
    params0 = init_params(kp0, input_dim, output_dim, hidden_dim, hidden_layers=0)
    y0 = original_baseline_adv_forward(x, params0)
    jax.block_until_ready(y0)
    ref0 = _reference_forward(x, params0)
    ok &= bool(jnp.allclose(y0, ref0, atol=1e-4, rtol=1e-4))
    assert y0.shape == (batch,), y0.shape

    # Case 2: hidden_layers=1: Linear(10,32) -> Tanh -> Linear(32,1) -> Sigmoid -> squeeze
    params1 = init_params(kp1, input_dim, output_dim, hidden_dim, hidden_layers=1)
    y1 = original_baseline_adv_forward(x, params1)
    jax.block_until_ready(y1)
    ref1 = _reference_forward(x, params1)
    ok &= bool(jnp.allclose(y1, ref1, atol=1e-4, rtol=1e-4))
    assert y1.shape == (batch,), y1.shape

    # Case 3: exercise the pipelined batch grid (2 tiles of 128 lanes), hidden_layers=2
    batch2 = 256
    x2 = jax.random.normal(kx2, (batch2, input_dim), jnp.float32)
    params2 = init_params(kp2, input_dim, output_dim, hidden_dim, hidden_layers=2)
    y2 = original_baseline_adv_forward(x2, params2, tile_b=128)
    jax.block_until_ready(y2)
    ref2 = _reference_forward(x2, params2)
    ok &= bool(jnp.allclose(y2, ref2, atol=1e-4, rtol=1e-4))
    assert y2.shape == (batch2,), y2.shape

    if ok:
        print("KERNEL_OK")
    else:
        print("MISMATCH")
</pallas_src>

<mosaic_0001>
module attributes {stable_mosaic.version = 11 : i64} {
  func.func @kernel(%arg0: i32, %arg1: memref<10x8xf32, #tpu.memory_space<vmem>>, %arg2: memref<1x10xf32, #tpu.memory_space<vmem>>, %arg3: memref<1x1xf32, #tpu.memory_space<vmem>>, %arg4: memref<1x8xf32, #tpu.memory_space<vmem>>) attributes {dimension_semantics = [#tpu.dimension_semantics<parallel>], iteration_bounds = array<i64: 1>, scalar_prefetch = 0 : i64, scratch_operands = 0 : i64, tpu.core_type = #tpu.core_type<tc>, window_params = [{transform_indices = @transform_0, window_bounds = array<i64: 10, 8>}, {pipeline_mode = #tpu.pipeline_mode<synchronous>, transform_indices = @transform_1, window_bounds = array<i64: 1, 10>}, {pipeline_mode = #tpu.pipeline_mode<synchronous>, transform_indices = @transform_2, window_bounds = array<i64: 1, 1>}, {transform_indices = @transform_3, window_bounds = array<i64: 1, 8>}]} {
    %c0 = arith.constant 0 : index
    %c0_0 = arith.constant 0 : index
    %0 = vector.load %arg1[%c0, %c0_0] : memref<10x8xf32, #tpu.memory_space<vmem>>, vector<10x8xf32>
    %c0_1 = arith.constant 0 : index
    %c0_2 = arith.constant 0 : index
    %1 = vector.load %arg2[%c0_1, %c0_2] : memref<1x10xf32, #tpu.memory_space<vmem>>, vector<1x10xf32>
    %c0_3 = arith.constant 0 : index
    %c0_4 = arith.constant 0 : index
    %2 = vector.load %arg3[%c0_3, %c0_4] : memref<1x1xf32, #tpu.memory_space<vmem>>, vector<1x1xf32>
    %cst = arith.constant dense<0.000000e+00> : vector<1x8xf32>
    %3 = tpu.matmul %1, %0, %cst {dimension_numbers = #tpu.dot_dimension_numbers<[1], [0], [0], [1], [0, 0, 1, 1], [], []>} : vector<1x10xf32>, vector<10x8xf32>, vector<1x8xf32> -> vector<1x8xf32>
    %4 = vector.broadcast %2 : vector<1x1xf32> to vector<1x8xf32>
    %5 = arith.addf %3, %4 : vector<1x8xf32>
    %6 = arith.negf %5 : vector<1x8xf32>
    %7 = math.exp %6 : vector<1x8xf32>
    %cst_5 = arith.constant 1.000000e+00 : f32
    %8 = vector.broadcast %cst_5 : f32 to vector<1x8xf32>
    %9 = arith.addf %8, %7 : vector<1x8xf32>
    %10 = arith.divf %8, %9 : vector<1x8xf32>
    %c0_6 = arith.constant 0 : index
    %c0_7 = arith.constant 0 : index
    %11 = vector.load %arg4[%c0_6, %c0_7] : memref<1x8xf32, #tpu.memory_space<vmem>>, vector<1x8xf32>
    tpu.vector_store %arg4[%c0_6, %c0_7], %10 {strides = array<i32>} : memref<1x8xf32, #tpu.memory_space<vmem>>, vector<1x8xf32>,
    return
  }
  func.func @transform_0(%arg0: i32) -> (i32, i32) {
    %c0_i32 = arith.constant 0 : i32
    %c0_i32_0 = arith.constant 0 : i32
    return %c0_i32, %arg0 : i32, i32
  }
  func.func @transform_1(%arg0: i32) -> (i32, i32) {
    %c0_i32 = arith.constant 0 : i32
    %c0_i32_0 = arith.constant 0 : i32
    %c0_i32_1 = arith.constant 0 : i32
    return %c0_i32, %c0_i32_0 : i32, i32
  }
  func.func @transform_2(%arg0: i32) -> (i32, i32) {
    %c0_i32 = arith.constant 0 : i32
    %c0_i32_0 = arith.constant 0 : i32
    %c0_i32_1 = arith.constant 0 : i32
    return %c0_i32, %c0_i32_0 : i32, i32
  }
  func.func @transform_3(%arg0: i32) -> (i32, i32) {
    %c0_i32 = arith.constant 0 : i32
    %c0_i32_0 = arith.constant 0 : i32
    return %c0_i32, %arg0 : i32, i32
  }
}

</mosaic_0001>

<llo_original>
// kernel: original_baseline_adv_forward.1
$region0: #{original_baseline_adv_forward.1}
  #allocation0 [shape = 'u32[]', space=smem, size = 0x4, offset = 0x4, fixed_abs, tag = 'smem constant byte address 0x4 - core index']
  #allocation1 [shape = 'u32[144,128]{1,0:T(1,128)}', space=vmem, size = 0x12000, scoped, tag = 'internal scratch']
  #allocation2 [shape = 'f32[1,1]{1,0:T(1,128)S(1)}', space=vmem, size = 0x200, scoped, tag = 'scoped memory for original_baseline_adv_forward.1']
  %s0 = inlined_call_operand.vmem [shape: f32[10,8], index: 0, kind: input, shape index: {}]
  %s1 = inlined_call_operand.vmem [shape: f32[1,10], index: 1, kind: input, shape index: {}]
  %s2 = inlined_call_operand.<no memory space> [shape: f32[1,1], index: 2, kind: input, shape index: {}]
  %s3 = inlined_call_operand.hbm [shape: f32[1,8], index: 3, kind: output, shape index: {}]
  %s4 = sld [smem:[#allocation0]]
  $region22: #{original_baseline_adv_forward.1} parent=0
    _
  %s6 = ssub.s32 1, %s4
  %s7 = scalar_select 0, %s6, %s4
  %v8 = vstv %s2
  %9 = vst [vmem:[#allocation2] sm:$0x1] %v8
  $region1: #{original_baseline_adv_forward.1} parent=0
    #allocation3 [shape = 'u8[512]{0}', space=vmem, size = 0x400, scoped, tag = 'output window, operand 0, single buffered']
    #allocation4 [shape = 's32[1]{0}', space=sflag, size = 0x4, scoped, tag = 'scoped memory for original_baseline_adv_forward.1']
    %10 = vsyncpa [#allocation4], 0
    // Predicated region
    $region2: #{original_baseline_adv_forward.1} parent=1 // pred_check
      _
    $region3: #{original_baseline_adv_forward.1} parent=1 // pred_check_branch
      %12 = sbr.rel (0) target = $region5
    $region4: #{original_baseline_adv_forward.1} parent=1 // pred_region
      _
    $region5: #{original_baseline_adv_forward.1} parent=1 // pred_fallthru
      _
    // Predicated region
    $region6: #{original_baseline_adv_forward.1} parent=1 // pred_check
      _
    $region7: #{original_baseline_adv_forward.1} parent=1 // pred_check_branch
      %14 = sbr.rel (0) target = $region9
    $region8: #{original_baseline_adv_forward.1} parent=1 // pred_region
      _
    $region9: #{original_baseline_adv_forward.1} parent=1 // pred_fallthru
      _
    // Predicated region
    $region10: #{original_baseline_adv_forward.1} parent=1 // pred_check
      _
    $region11: #{original_baseline_adv_forward.1} parent=1 // pred_check_branch
      %16 = sbr.rel (0) target = $region13
    $region12: #{original_baseline_adv_forward.1} parent=1 // pred_region
      _
    $region13: #{original_baseline_adv_forward.1} parent=1 // pred_fallthru
      _
    %v17 = vld [vmem:[%s0] sm:$0xff]
    %v18 = vld [vmem:[%s0 + $0x8] sm:$0x3]
    %v19 = vld [vmem:[%s1] sm:$0x1]
    %v20 = vld [vmem:[#allocation2] sm:$0x1]
    %22 = vset.pattern.permute.xlu0 0
    %23 = vperm.xlu0 %22, %v20
    %v24 = vpop.permute.xlu0 %23
    %v26 = vlaneseq
    %v27 = vshrl.u32 %v26, 7
    %v28 = vsub.s32 0, %v27
    %v29 = vrot.slane %v24, %v28
    %vm30 = vcmask 80896
    %v32 = vsel %vm30, %v19, 0
    %vm34 = vcmask 1041408
    %v36 = vsel %vm34, %v18, 0
    %38 = vmatprep.subr.mxu0 0.0
    %39 = vmatpush1.msra.mxu0 %v17
    %40 = vmatprep.subr.mxu0 0.0
    %41 = vmatpush1.msra.mxu0 %v36
    %42 = vmatprep.subr.mxu0 0.0
    %43 = vmatpush1.msra.mxu0 0.0
    %44 = vmatprep.subr.mxu0 0.0
    %45 = vmatpush1.msra.mxu0 0.0
    %46 = vmatprep.subr.mxu0 0.0
    %47 = vmatpush1.msra.mxu0 0.0
    %48 = vmatprep.subr.mxu0 0.0
    %49 = vmatpush1.msra.mxu0 0.0
    %50 = vmatprep.subr.mxu0 0.0
    %51 = vmatpush1.msra.mxu0 0.0
    %52 = vmatprep.subr.mxu0 0.0
    %53 = vmatpush1.msra.mxu0 0.0
    %54 = vmatprep.subr.mxu0 0.0
    %55 = vmatpush1.msra.mxu0 0.0
    %56 = vmatprep.subr.mxu0 0.0
    %57 = vmatpush1.msra.mxu0 0.0
    %58 = vmatprep.subr.mxu0 0.0
    %59 = vmatpush1.msra.mxu0 0.0
    %60 = vmatprep.subr.mxu0 0.0
    %61 = vmatpush1.msra.mxu0 0.0
    %62 = vmatprep.subr.mxu0 0.0
    %63 = vmatpush1.msra.mxu0 0.0
    %64 = vmatprep.subr.mxu0 0.0
    %65 = vmatpush1.msra.mxu0 0.0
    %66 = vmatprep.subr.mxu0 0.0
    %67 = vmatpush1.msra.mxu0 0.0
    %68 = vmatprep.subr.mxu0 0.0
    %69 = vmatpush1.msra.mxu0 0.0
    %70 = vmatprep.subr.mxu0 0.0
    %71 = vmatpush1.msra.mxu0 0.0
    %72 = vmatprep.subr.mxu0 0.0
    %73 = vmatpush1.msra.mxu0 0.0
    %74 = vmatprep.subr.mxu0 0.0
    %75 = vmatpush1.msra.mxu0 0.0
    %76 = vmatprep.subr.mxu0 0.0
    %77 = vmatpush1.msra.mxu0 0.0
    %78 = vmatprep.subr.mxu0 0.0
    %79 = vmatpush1.msra.mxu0 0.0
    %80 = vmatprep.subr.mxu0 0.0
    %81 = vmatpush1.msra.mxu0 0.0
    %82 = vmatprep.subr.mxu0 0.0
    %83 = vmatpush1.msra.mxu0 0.0
    %84 = vmatprep.subr.mxu0 0.0
    %85 = vmatpush1.msra.mxu0 0.0
    %86 = vmatprep.subr.mxu0 0.0
    %87 = vmatpush1.msra.mxu0 0.0
    %88 = vmatprep.subr.mxu0 0.0
    %89 = vmatpush1.msra.mxu0 0.0
    %90 = vmatprep.subr.mxu0 0.0
    %91 = vmatpush1.msra.mxu0 0.0
    %92 = vmatprep.subr.mxu0 0.0
    %93 = vmatpush1.msra.mxu0 0.0
    %94 = vmatprep.subr.mxu0 0.0
    %95 = vmatpush1.msra.mxu0 0.0
    %96 = vmatprep.subr.mxu0 0.0
    %97 = vmatpush1.msra.mxu0 0.0
    %98 = vmatprep.subr.mxu0 0.0
    %99 = vmatpush1.msra.mxu0 0.0
    %100 = vmatprep.subr.mxu0 0.0
    %101 = vmatpush1.msra.mxu0 0.0
    %102 = vmatprep.mubr.f32.mxu0 0.0
    %103 = vmatmul.mubr.f32.gmra.mrb[0].mxu0 %v32
    %v104 = vpop.f32.mrb[0].mxu0
    %v105 = vadd.f32 %v29, %v104
    %v106 = vpop.f32.mrb[0].mxu0
    %107 = vdwg.mxu0
    %v108 = vxor.u32 %v105, 2147483648
    %v109 = vmul.f32 %v108, 1.442695
    %v110 = vpow.pop %v109
    %v111 = vadd.f32 %v110, 1.0
    %v112 = vrcp.pop %v111
    %v113 = vmul.f32 1.0, %v112
    %vm114 = vcmask 57344
    %115 = vst.msk [vmem:[#allocation3] sm:$0x1] %vm114, %v113
    // Predicated region
    $region14: #{original_baseline_adv_forward.1} parent=1 // pred_check
      _
    $region15: #{original_baseline_adv_forward.1} parent=1 // pred_check_branch
      %117 = sbr.rel (0) target = $region17
    $region16: #{original_baseline_adv_forward.1} parent=1 // pred_region
      %s119 = ssub.s32 16, 16
      %120 = vsyncadd [#allocation4], %s119
      %s122 = sshll.u32 [#allocation3], 4
      %s123 = int_to_ptr.vmem [resolvable:$true] %s122
      %125 = dma.vmem_to_hbm [thread:$0]  %s123, 16, %s3, [#allocation4]
    $region17: #{original_baseline_adv_forward.1} parent=1 // pred_fallthru
      _
    // Predicated region
    $region18: #{original_baseline_adv_forward.1} parent=1 // pred_check
      _
    $region19: #{original_baseline_adv_forward.1} parent=1 // pred_check_branch
      %127 = sbr.rel (0) target = $region21
    $region20: #{original_baseline_adv_forward.1} parent=1 // pred_region
      %128 = dma.done [#allocation4], 16
    $region21: #{original_baseline_adv_forward.1} parent=1 // pred_fallthru
      _
    %129 = vsyncpa [#allocation4], 1

</llo_original>
